<compile_context>
chip_gen: v7x
topology: tpu7x:2x2x1
jax: 0.10.0
libtpu: 0.0.40
codegen_flags: <defaults>
</compile_context>

<pallas_src>
import jax
import jax.numpy as jnp
from jax.experimental import pallas as pl
from jax.experimental.pallas import tpu as pltpu

OUT_PAD = 128  # lane-dense output width (>= a_dim + 1, multiple of 128)


def net_kernel(x_ref, w1_ref, b_ref, w2_ref, o_ref):
    """Fused A3C actor-critic forward.

    x_ref : (bm, s_dim)
    w1_ref: (s_dim, 2*hidden)   = [Wp1 | Wv1]
    b_ref : (2, 2*hidden)       row 0 = [bp1 | bv1], row 1[:OUT_PAD] = padded [bp2 | bv2]
    w2_ref: (2*hidden, OUT_PAD) block-diagonal: Wp2 in [0:H, 0:a_dim], Wv2 in [H:2H, a_dim]
    o_ref : (bm, OUT_PAD)       logits in cols [0:a_dim], value in col [a_dim]
    """
    x = x_ref[...]

    # Stage 1: one MXU push covers both branches' first layers.
    h = jnp.dot(x, w1_ref[...], preferred_element_type=jnp.float32)
    h = jnp.maximum(h + b_ref[0:1, :], 0.0)  # F.relu, fused bias

    # Stage 2: one MXU push through the block-diagonal second-layer weight.
    out = jnp.dot(h, w2_ref[...], preferred_element_type=jnp.float32)
    o_ref[...] = (out + b_ref[1:2, 0:OUT_PAD]).astype(o_ref.dtype)


def _choose_block_b(B):
    """Batch block size: whole batch when small, 128-256 rows when large."""
    if B <= 256:
        return B
    for cand in (256, 128, 64, 32, 16, 8):
        if B % cand == 0:
            return cand
    return B  # fallback: single block (full dim is always legal)


def net_forward(x, fused_params, a_dim):
    """Run the fused Pallas kernel and split the lane-padded output."""
    w1, b, w2 = fused_params
    B, s_dim = x.shape
    two_h = w1.shape[1]
    bm = _choose_block_b(B)
    grid = (B // bm,)

    cost = pl.CostEstimate(
        flops=2 * B * (s_dim * two_h + two_h * OUT_PAD),
        transcendentals=0,
        bytes_accessed=4 * (x.size + w1.size + b.size + w2.size + B * OUT_PAD),
    )

    out = pl.pallas_call(
        net_kernel,
        out_shape=jax.ShapeDtypeStruct((B, OUT_PAD), jnp.float32),
        grid=grid,
        in_specs=[
            # batch-blocked activations (blocked specs live in VMEM by default)
            pl.BlockSpec((bm, s_dim), lambda i: (i, 0)),
            # weights/biases: constant block index -> DMA'd once, VMEM-resident
            pl.BlockSpec((s_dim, two_h), lambda i: (0, 0)),
            pl.BlockSpec((2, two_h), lambda i: (0, 0)),
            pl.BlockSpec((two_h, OUT_PAD), lambda i: (0, 0)),
        ],
        out_specs=pl.BlockSpec((bm, OUT_PAD), lambda i: (i, 0)),
        compiler_params=pltpu.CompilerParams(
            dimension_semantics=("parallel",),  # shard batch blocks across TCs (v7x)
        ),
        cost_estimate=cost,
    )(x, w1, b, w2)

    logits = out[:, :a_dim]
    value = out[:, a_dim:a_dim + 1]
    return logits, value


def init_params(key, s_dim, a_dim, hidden=256):
    """Deterministic init mirroring the common A3C `set_init`:
       weights ~ N(0, 0.1), biases = 0. Stored as [in, out]."""
    ks = jax.random.split(key, 4)
    wp1 = 0.1 * jax.random.normal(ks[0], (s_dim, hidden), jnp.float32)
    bp1 = jnp.zeros((1, hidden), jnp.float32)
    wp2 = 0.1 * jax.random.normal(ks[1], (hidden, a_dim), jnp.float32)
    bp2 = jnp.zeros((1, a_dim), jnp.float32)
    wv1 = 0.1 * jax.random.normal(ks[2], (s_dim, hidden), jnp.float32)
    bv1 = jnp.zeros((1, hidden), jnp.float32)
    wv2 = 0.1 * jax.random.normal(ks[3], (hidden, 1), jnp.float32)
    bv2 = jnp.zeros((1, 1), jnp.float32)
    return (wp1, bp1, wp2, bp2, wv1, bv1, wv2, bv2)


def fuse_params(params, a_dim, out_pad=OUT_PAD):
    """One-time wrapper-side re-layout: 8 tensors -> 3 kernel operands."""
    (wp1, bp1, wp2, bp2, wv1, bv1, wv2, bv2) = params
    hidden = wp1.shape[1]
    assert 2 * hidden >= out_pad and a_dim + 1 <= out_pad

    # Stage 1: horizontally concatenated first-layer weights/biases.
    w1 = jnp.concatenate([wp1, wv1], axis=1)                       # (s_dim, 2H)
    b1 = jnp.concatenate([bp1, bv1], axis=1)                       # (1, 2H)

    # Stage 2: block-diagonal, lane-padded second-layer weight.
    w2 = jnp.zeros((2 * hidden, out_pad), jnp.float32)
    w2 = w2.at[:hidden, :a_dim].set(wp2)
    w2 = w2.at[hidden:, a_dim:a_dim + 1].set(wv2)                  # (2H, 128)

    b2 = jnp.zeros((1, out_pad), jnp.float32)
    b2 = b2.at[:, :a_dim].set(bp2)
    b2 = b2.at[:, a_dim:a_dim + 1].set(bv2)                        # (1, 128)

    # Pack both biases into a single (2, 2H) array.
    b = jnp.zeros((2, 2 * hidden), jnp.float32)
    b = b.at[0:1, :].set(b1)
    b = b.at[1:2, :out_pad].set(b2)
    return w1, b, w2


def net_forward_ref(x, params):
    """Pure-JAX reference of the PyTorch forward, for correctness checking."""
    (wp1, bp1, wp2, bp2, wv1, bv1, wv2, bv2) = params
    hp = jnp.maximum(x @ wp1 + bp1, 0.0)
    logits = hp @ wp2 + bp2
    hv = jnp.maximum(x @ wv1 + bv1, 0.0)
    value = hv @ wv2 + bv2
    return logits, value


if __name__ == "__main__":
    key = jax.random.PRNGKey(0)
    k_x, k_p = jax.random.split(key)

    # Small shapes consistent with an A3C MLP: batch=8 states, s_dim=4, a_dim=2
    B, S_DIM, A_DIM, HIDDEN = 8, 4, 2, 256
    x = jax.random.normal(k_x, (B, S_DIM), jnp.float32)
    params = init_params(k_p, S_DIM, A_DIM, HIDDEN)
    fused = fuse_params(params, A_DIM)

    logits, value = net_forward(x, fused, A_DIM)
    jax.block_until_ready((logits, value))

    # Sanity check against the pure-JAX reference.
    logits_ref, value_ref = net_forward_ref(x, params)
    assert logits.shape == (B, A_DIM) and value.shape == (B, 1)
    assert jnp.allclose(logits, logits_ref, atol=1e-5, rtol=1e-5)
    assert jnp.allclose(value, value_ref, atol=1e-5, rtol=1e-5)

    # TODO(synk): choose_action (Categorical sampling) and loss_func are
    # host-side training utilities, not part of the forward kernel.

    print("KERNEL_OK")
</pallas_src>

<mosaic_0001>
module attributes {stable_mosaic.version = 11 : i64} {
  func.func @net_kernel(%arg0: i32, %arg1: memref<8x4xf32, #tpu.memory_space<vmem>>, %arg2: memref<4x512xf32, #tpu.memory_space<vmem>>, %arg3: memref<2x512xf32, #tpu.memory_space<vmem>>, %arg4: memref<512x128xf32, #tpu.memory_space<vmem>>, %arg5: memref<8x128xf32, #tpu.memory_space<vmem>>) attributes {dimension_semantics = [#tpu.dimension_semantics<parallel>], iteration_bounds = array<i64: 1>, scalar_prefetch = 0 : i64, scratch_operands = 0 : i64, tpu.core_type = #tpu.core_type<tc>, window_params = [{transform_indices = @transform_0, window_bounds = array<i64: 8, 4>}, {pipeline_mode = #tpu.pipeline_mode<synchronous>, transform_indices = @transform_1, window_bounds = array<i64: 4, 512>}, {pipeline_mode = #tpu.pipeline_mode<synchronous>, transform_indices = @transform_2, window_bounds = array<i64: 2, 512>}, {pipeline_mode = #tpu.pipeline_mode<synchronous>, transform_indices = @transform_3, window_bounds = array<i64: 512, 128>}, {transform_indices = @transform_4, window_bounds = array<i64: 8, 128>}]} {
    %c0 = arith.constant 0 : index
    %c0_0 = arith.constant 0 : index
    %0 = vector.load %arg1[%c0, %c0_0] : memref<8x4xf32, #tpu.memory_space<vmem>>, vector<8x4xf32>
    %c0_1 = arith.constant 0 : index
    %c0_2 = arith.constant 0 : index
    %1 = vector.load %arg2[%c0_1, %c0_2] : memref<4x512xf32, #tpu.memory_space<vmem>>, vector<4x512xf32>
    %cst = arith.constant dense<0.000000e+00> : vector<8x512xf32>
    %2 = tpu.matmul %0, %1, %cst {dimension_numbers = #tpu.dot_dimension_numbers<[1], [0], [0], [1], [0, 0, 1, 1], [], []>} : vector<8x4xf32>, vector<4x512xf32>, vector<8x512xf32> -> vector<8x512xf32>
    %c0_3 = arith.constant 0 : index
    %c0_4 = arith.constant 0 : index
    %3 = vector.load %arg3[%c0_3, %c0_4] : memref<2x512xf32, #tpu.memory_space<vmem>>, vector<1x512xf32>
    %4 = vector.broadcast %3 : vector<1x512xf32> to vector<8x512xf32>
    %5 = arith.addf %2, %4 : vector<8x512xf32>
    %cst_5 = arith.constant 0.000000e+00 : f32
    %6 = vector.broadcast %cst_5 : f32 to vector<8x512xf32>
    %7 = arith.maximumf %5, %6 : vector<8x512xf32>
    %c0_6 = arith.constant 0 : index
    %c0_7 = arith.constant 0 : index
    %8 = vector.load %arg4[%c0_6, %c0_7] : memref<512x128xf32, #tpu.memory_space<vmem>>, vector<512x128xf32>
    %cst_8 = arith.constant dense<0.000000e+00> : vector<8x128xf32>
    %9 = tpu.matmul %7, %8, %cst_8 {dimension_numbers = #tpu.dot_dimension_numbers<[1], [0], [0], [1], [0, 0, 1, 1], [], []>} : vector<8x512xf32>, vector<512x128xf32>, vector<8x128xf32> -> vector<8x128xf32>
    %c1 = arith.constant 1 : index
    %c0_9 = arith.constant 0 : index
    %10 = vector.load %arg3[%c1, %c0_9] : memref<2x512xf32, #tpu.memory_space<vmem>>, vector<1x128xf32>
    %11 = vector.broadcast %10 : vector<1x128xf32> to vector<8x128xf32>
    %12 = arith.addf %9, %11 : vector<8x128xf32>
    %c0_10 = arith.constant 0 : index
    %c0_11 = arith.constant 0 : index
    %13 = vector.load %arg5[%c0_10, %c0_11] : memref<8x128xf32, #tpu.memory_space<vmem>>, vector<8x128xf32>
    tpu.vector_store %arg5[%c0_10, %c0_11], %12 {strides = array<i32>} : memref<8x128xf32, #tpu.memory_space<vmem>>, vector<8x128xf32>,
    return
  }
  func.func @transform_0(%arg0: i32) -> (i32, i32) {
    %c0_i32 = arith.constant 0 : i32
    %c0_i32_0 = arith.constant 0 : i32
    return %arg0, %c0_i32 : i32, i32
  }
  func.func @transform_1(%arg0: i32) -> (i32, i32) {
    %c0_i32 = arith.constant 0 : i32
    %c0_i32_0 = arith.constant 0 : i32
    %c0_i32_1 = arith.constant 0 : i32
    return %c0_i32, %c0_i32_0 : i32, i32
  }
  func.func @transform_2(%arg0: i32) -> (i32, i32) {
    %c0_i32 = arith.constant 0 : i32
    %c0_i32_0 = arith.constant 0 : i32
    %c0_i32_1 = arith.constant 0 : i32
    return %c0_i32, %c0_i32_0 : i32, i32
  }
  func.func @transform_3(%arg0: i32) -> (i32, i32) {
    %c0_i32 = arith.constant 0 : i32
    %c0_i32_0 = arith.constant 0 : i32
    %c0_i32_1 = arith.constant 0 : i32
    return %c0_i32, %c0_i32_0 : i32, i32
  }
  func.func @transform_4(%arg0: i32) -> (i32, i32) {
    %c0_i32 = arith.constant 0 : i32
    %c0_i32_0 = arith.constant 0 : i32
    return %arg0, %c0_i32 : i32, i32
  }
}

</mosaic_0001>

<llo_original>
// kernel: tpu_custom_call.1
$region0: #{tpu_custom_call.1}
  #allocation0 [shape = 'u32[]', space=smem, size = 0x4, offset = 0x4, fixed_abs, tag = 'smem constant byte address 0x4 - core index']
  #allocation1 [shape = 'u32[144,128]{1,0:T(1,128)}', space=vmem, size = 0x12000, scoped, tag = 'internal scratch']
  %s0 = inlined_call_operand.vmem [shape: f32[8,4], index: 0, kind: input, shape index: {}]
  %s1 = inlined_call_operand.hbm [shape: f32[4,512], index: 1, kind: input, shape index: {}]
  %s2 = inlined_call_operand.vmem [shape: f32[2,512], index: 2, kind: input, shape index: {}]
  %s3 = inlined_call_operand.hbm [shape: f32[512,128], index: 3, kind: input, shape index: {}]
  %s4 = inlined_call_operand.hbm [shape: f32[8,128], index: 4, kind: output, shape index: {}]
  %s5 = sld [smem:[#allocation0]]
  $region34: #{tpu_custom_call.1} parent=0
    _
  %s7 = ssub.s32 1, %s5
  %s8 = scalar_select 0, %s7, %s5
  $region1: #{tpu_custom_call.1} parent=0
    #allocation2 [shape = 'u8[8192]{0}', space=vmem, size = 0x2000, scoped, tag = 'input window, operand 1, single buffered']
    #allocation3 [shape = 's32[1]{0}', space=sflag, size = 0x4, scoped, tag = 'scoped memory for tpu_custom_call.1']
    #allocation4 [shape = 's32[1]{0}', space=sflag, size = 0x4, scoped, tag = 'scoped memory for tpu_custom_call.1']
    #allocation5 [shape = 'u8[262144]{0}', space=vmem, size = 0x40000, scoped, tag = 'input window, operand 3, single buffered']
    #allocation6 [shape = 's32[1]{0}', space=sflag, size = 0x4, scoped, tag = 'scoped memory for tpu_custom_call.1']
    #allocation7 [shape = 'u8[4096]{0}', space=vmem, size = 0x1000, scoped, tag = 'output window, operand 0, single buffered']
    %9 = vsyncpa [#allocation3], 0
    %10 = vsyncpa [#allocation6], 0
    %11 = vsyncpa [#allocation4], 0
    // Predicated region
    $region2: #{tpu_custom_call.1} parent=1 // pred_check
      _
    $region3: #{tpu_custom_call.1} parent=1 // pred_check_branch
      %13 = sbr.rel (0) target = $region5
    $region4: #{tpu_custom_call.1} parent=1 // pred_region
      _
    $region5: #{tpu_custom_call.1} parent=1 // pred_fallthru
      _
    // Predicated region
    $region6: #{tpu_custom_call.1} parent=1 // pred_check
      _
    $region7: #{tpu_custom_call.1} parent=1 // pred_check_branch
      %15 = sbr.rel (0) target = $region9
    $region8: #{tpu_custom_call.1} parent=1 // pred_region
      %s17 = ssub.s32 256, 256
      %18 = vsyncadd [#allocation3], %s17
      %s20 = sshll.u32 [#allocation2], 4
      %s21 = int_to_ptr.vmem [resolvable:$true] %s20
      %23 = dma.hbm_to_vmem [thread:$0]  %s1, 256, %s21, [#allocation3]
    $region9: #{tpu_custom_call.1} parent=1 // pred_fallthru
      _
    // Predicated region
    $region10: #{tpu_custom_call.1} parent=1 // pred_check
      _
    $region11: #{tpu_custom_call.1} parent=1 // pred_check_branch
      %25 = sbr.rel (0) target = $region13
    $region12: #{tpu_custom_call.1} parent=1 // pred_region
      _
    $region13: #{tpu_custom_call.1} parent=1 // pred_fallthru
      _
    // Predicated region
    $region14: #{tpu_custom_call.1} parent=1 // pred_check
      _
    $region15: #{tpu_custom_call.1} parent=1 // pred_check_branch
      %27 = sbr.rel (0) target = $region17
    $region16: #{tpu_custom_call.1} parent=1 // pred_region
      %s29 = ssub.s32 8192, 8192
      %30 = vsyncadd [#allocation6], %s29
      %s31 = sshll.u32 [#allocation5], 4
      %s32 = int_to_ptr.vmem [resolvable:$true] %s31
      %37 = dma.hbm_to_vmem [thread:$0]  %s3, 8192, %s32, [#allocation6], 128, 128, 8
    $region17: #{tpu_custom_call.1} parent=1 // pred_fallthru
      _
    // Predicated region
    $region18: #{tpu_custom_call.1} parent=1 // pred_check
      _
    $region19: #{tpu_custom_call.1} parent=1 // pred_check_branch
      %39 = sbr.rel (0) target = $region21
    $region20: #{tpu_custom_call.1} parent=1 // pred_region
      %40 = dma.done [#allocation3], 256
    $region21: #{tpu_custom_call.1} parent=1 // pred_fallthru
      _
    // Predicated region
    $region22: #{tpu_custom_call.1} parent=1 // pred_check
      _
    $region23: #{tpu_custom_call.1} parent=1 // pred_check_branch
      %42 = sbr.rel (0) target = $region25
    $region24: #{tpu_custom_call.1} parent=1 // pred_region
      %43 = dma.done [#allocation6], 8192
    $region25: #{tpu_custom_call.1} parent=1 // pred_fallthru
      _
    %v44 = vld [vmem:[%s0] sm:$0xff]
    %v45 = vld [vmem:[#allocation2] sm:$0xff]
    %v46 = vld [vmem:[#allocation2 + $0x8] sm:$0xff]
    %v47 = vld [vmem:[%s2] ss:$2 sm:$0xf]
    %v49 = vlaneseq
    %v50 = vshrl.u32 %v49, 7
    %v51 = vsub.s32 0, %v50
    %v52 = vrot.slane %v47, %v51
    %v53 = vlaneseq
    %v54 = vshrl.u32 %v53, 7
    %v55 = vsub.s32 1, %v54
    %v56 = vrot.slane %v47, %v55
    %v57 = vlaneseq
    %v58 = vshrl.u32 %v57, 7
    %v59 = vsub.s32 2, %v58
    %v60 = vrot.slane %v47, %v59
    %v61 = vlaneseq
    %v62 = vshrl.u32 %v61, 7
    %v63 = vsub.s32 3, %v62
    %v64 = vrot.slane %v47, %v63
    %v71 = vcombine.high %v45, %v45
    %v72 = vcombine.high %v46, %v46
    %vm73 = vcmask 31744
    %v75 = vsel %vm73, %v44, 0
    %vm77 = vcmask 1043456
    %v78 = vsel %vm77, %v45, 0
    %v80 = vsel %vm77, %v71, 0
    %v82 = vsel %vm77, %v46, 0
    %v84 = vsel %vm77, %v72, 0
    %86 = vmatprep.subr.mxu0 %v80
    %87 = vmatpush1.msra.mxu0 %v78
    %88 = vmatprep.subr.mxu0 0.0
    %89 = vmatpush1.msra.mxu0 0.0
    %90 = vmatprep.subr.mxu0 0.0
    %91 = vmatpush1.msra.mxu0 0.0
    %92 = vmatprep.subr.mxu0 0.0
    %93 = vmatpush1.msra.mxu0 0.0
    %94 = vmatprep.subr.mxu0 0.0
    %95 = vmatpush1.msra.mxu0 0.0
    %96 = vmatprep.subr.mxu0 0.0
    %97 = vmatpush1.msra.mxu0 0.0
    %98 = vmatprep.subr.mxu0 0.0
    %99 = vmatpush1.msra.mxu0 0.0
    %100 = vmatprep.subr.mxu0 0.0
    %101 = vmatpush1.msra.mxu0 0.0
    %102 = vmatprep.subr.mxu0 0.0
    %103 = vmatpush1.msra.mxu0 0.0
    %104 = vmatprep.subr.mxu0 0.0
    %105 = vmatpush1.msra.mxu0 0.0
    %106 = vmatprep.subr.mxu0 0.0
    %107 = vmatpush1.msra.mxu0 0.0
    %108 = vmatprep.subr.mxu0 0.0
    %109 = vmatpush1.msra.mxu0 0.0
    %110 = vmatprep.subr.mxu0 0.0
    %111 = vmatpush1.msra.mxu0 0.0
    %112 = vmatprep.subr.mxu0 0.0
    %113 = vmatpush1.msra.mxu0 0.0
    %114 = vmatprep.subr.mxu0 0.0
    %115 = vmatpush1.msra.mxu0 0.0
    %116 = vmatprep.subr.mxu0 0.0
    %117 = vmatpush1.msra.mxu0 0.0
    %118 = vmatprep.subr.mxu0 0.0
    %119 = vmatpush1.msra.mxu0 0.0
    %120 = vmatprep.subr.mxu0 0.0
    %121 = vmatpush1.msra.mxu0 0.0
    %122 = vmatprep.subr.mxu0 0.0
    %123 = vmatpush1.msra.mxu0 0.0
    %124 = vmatprep.subr.mxu0 0.0
    %125 = vmatpush1.msra.mxu0 0.0
    %126 = vmatprep.subr.mxu0 0.0
    %127 = vmatpush1.msra.mxu0 0.0
    %128 = vmatprep.subr.mxu0 0.0
    %129 = vmatpush1.msra.mxu0 0.0
    %130 = vmatprep.subr.mxu0 0.0
    %131 = vmatpush1.msra.mxu0 0.0
    %132 = vmatprep.subr.mxu0 0.0
    %133 = vmatpush1.msra.mxu0 0.0
    %134 = vmatprep.subr.mxu0 0.0
    %135 = vmatpush1.msra.mxu0 0.0
    %136 = vmatprep.subr.mxu0 0.0
    %137 = vmatpush1.msra.mxu0 0.0
    %138 = vmatprep.subr.mxu0 0.0
    %139 = vmatpush1.msra.mxu0 0.0
    %140 = vmatprep.subr.mxu0 0.0
    %141 = vmatpush1.msra.mxu0 0.0
    %142 = vmatprep.subr.mxu0 0.0
    %143 = vmatpush1.msra.mxu0 0.0
    %144 = vmatprep.subr.mxu0 0.0
    %145 = vmatpush1.msra.mxu0 0.0
    %146 = vmatprep.subr.mxu0 0.0
    %147 = vmatpush1.msra.mxu0 0.0
    %148 = vmatprep.subr.mxu0 0.0
    %149 = vmatpush1.msra.mxu0 0.0
    %150 = vmatprep.mubr.f32.mxu0 0.0
    %151 = vmatmul.mubr.f32.gmra.mrb[0].mxu0 %v75
    %v152 = vpop.f32.mrb[0].mxu0
    %v153 = vadd.f32 %v52, %v152
    %v154 = vpop.f32.mrb[0].mxu0
    %v155 = vadd.f32 %v56, %v154
    %156 = vdwg.mxu0
    %157 = vmatprep.subr.mxu0 %v84
    %158 = vmatpush1.msra.mxu0 %v82
    %159 = vmatprep.subr.mxu0 0.0
    %160 = vmatpush1.msra.mxu0 0.0
    %161 = vmatprep.subr.mxu0 0.0
    %162 = vmatpush1.msra.mxu0 0.0
    %163 = vmatprep.subr.mxu0 0.0
    %164 = vmatpush1.msra.mxu0 0.0
    %165 = vmatprep.subr.mxu0 0.0
    %166 = vmatpush1.msra.mxu0 0.0
    %167 = vmatprep.subr.mxu0 0.0
    %168 = vmatpush1.msra.mxu0 0.0
    %169 = vmatprep.subr.mxu0 0.0
    %170 = vmatpush1.msra.mxu0 0.0
    %171 = vmatprep.subr.mxu0 0.0
    %172 = vmatpush1.msra.mxu0 0.0
    %173 = vmatprep.subr.mxu0 0.0
    %174 = vmatpush1.msra.mxu0 0.0
    %175 = vmatprep.subr.mxu0 0.0
    %176 = vmatpush1.msra.mxu0 0.0
    %177 = vmatprep.subr.mxu0 0.0
    %178 = vmatpush1.msra.mxu0 0.0
    %179 = vmatprep.subr.mxu0 0.0
    %180 = vmatpush1.msra.mxu0 0.0
    %181 = vmatprep.subr.mxu0 0.0
    %182 = vmatpush1.msra.mxu0 0.0
    %183 = vmatprep.subr.mxu0 0.0
    %184 = vmatpush1.msra.mxu0 0.0
    %185 = vmatprep.subr.mxu0 0.0
    %186 = vmatpush1.msra.mxu0 0.0
    %187 = vmatprep.subr.mxu0 0.0
    %188 = vmatpush1.msra.mxu0 0.0
    %189 = vmatprep.subr.mxu0 0.0
    %190 = vmatpush1.msra.mxu0 0.0
    %191 = vmatprep.subr.mxu0 0.0
    %192 = vmatpush1.msra.mxu0 0.0
    %193 = vmatprep.subr.mxu0 0.0
    %194 = vmatpush1.msra.mxu0 0.0
    %195 = vmatprep.subr.mxu0 0.0
    %196 = vmatpush1.msra.mxu0 0.0
    %197 = vmatprep.subr.mxu0 0.0
    %198 = vmatpush1.msra.mxu0 0.0
    %199 = vmatprep.subr.mxu0 0.0
    %200 = vmatpush1.msra.mxu0 0.0
    %201 = vmatprep.subr.mxu0 0.0
    %202 = vmatpush1.msra.mxu0 0.0
    %203 = vmatprep.subr.mxu0 0.0
    %204 = vmatpush1.msra.mxu0 0.0
    %205 = vmatprep.subr.mxu0 0.0
    %206 = vmatpush1.msra.mxu0 0.0
    %207 = vmatprep.subr.mxu0 0.0
    %208 = vmatpush1.msra.mxu0 0.0
    %209 = vmatprep.subr.mxu0 0.0
    %210 = vmatpush1.msra.mxu0 0.0
    %211 = vmatprep.subr.mxu0 0.0
    %212 = vmatpush1.msra.mxu0 0.0
    %213 = vmatprep.subr.mxu0 0.0
    %214 = vmatpush1.msra.mxu0 0.0
    %215 = vmatprep.subr.mxu0 0.0
    %216 = vmatpush1.msra.mxu0 0.0
    %217 = vmatprep.subr.mxu0 0.0
    %218 = vmatpush1.msra.mxu0 0.0
    %219 = vmatprep.subr.mxu0 0.0
    %220 = vmatpush1.msra.mxu0 0.0
    %221 = vmatprep.mubr.f32.mxu0 0.0
    %222 = vmatmul.mubr.f32.gmra.mrb[0].mxu0 %v75
    %v223 = vpop.f32.mrb[0].mxu0
    %v224 = vadd.f32 %v60, %v223
    %v225 = vpop.f32.mrb[0].mxu0
    %v226 = vadd.f32 %v64, %v225
    %227 = vdwg.mxu0
    %v228 = vmax.f32 %v153, 0.0
    %v229 = vmax.f32 %v155, 0.0
    %v230 = vmax.f32 %v224, 0.0
    %v231 = vmax.f32 %v226, 0.0
    %v232 = vld [vmem:[#allocation5] sm:$0xff]
    %v233 = vld [vmem:[#allocation5 + $0x8] sm:$0xff]
    %v234 = vld [vmem:[#allocation5 + $0x10] sm:$0xff]
    %v235 = vld [vmem:[#allocation5 + $0x18] sm:$0xff]
    %v236 = vld [vmem:[#allocation5 + $0x20] sm:$0xff]
    %v237 = vld [vmem:[#allocation5 + $0x28] sm:$0xff]
    %v238 = vld [vmem:[#allocation5 + $0x30] sm:$0xff]
    %v239 = vld [vmem:[#allocation5 + $0x38] sm:$0xff]
    %v240 = vld [vmem:[#allocation5 + $0x40] sm:$0xff]
    %v241 = vld [vmem:[#allocation5 + $0x48] sm:$0xff]
    %v242 = vld [vmem:[#allocation5 + $0x50] sm:$0xff]
    %v243 = vld [vmem:[#allocation5 + $0x58] sm:$0xff]
    %v244 = vld [vmem:[#allocation5 + $0x60] sm:$0xff]
    %v245 = vld [vmem:[#allocation5 + $0x68] sm:$0xff]
    %v246 = vld [vmem:[#allocation5 + $0x70] sm:$0xff]
    %v247 = vld [vmem:[#allocation5 + $0x78] sm:$0xff]
    %v248 = vld [vmem:[#allocation5 + $0x80] sm:$0xff]
    %v249 = vld [vmem:[#allocation5 + $0x88] sm:$0xff]
    %v250 = vld [vmem:[#allocation5 + $0x90] sm:$0xff]
    %v251 = vld [vmem:[#allocation5 + $0x98] sm:$0xff]
    %v252 = vld [vmem:[#allocation5 + $0xa0] sm:$0xff]
    %v253 = vld [vmem:[#allocation5 + $0xa8] sm:$0xff]
    %v254 = vld [vmem:[#allocation5 + $0xb0] sm:$0xff]
    %v255 = vld [vmem:[#allocation5 + $0xb8] sm:$0xff]
    %v256 = vld [vmem:[#allocation5 + $0xc0] sm:$0xff]
    %v257 = vld [vmem:[#allocation5 + $0xc8] sm:$0xff]
    %v258 = vld [vmem:[#allocation5 + $0xd0] sm:$0xff]
    %v259 = vld [vmem:[#allocation5 + $0xd8] sm:$0xff]
    %v260 = vld [vmem:[#allocation5 + $0xe0] sm:$0xff]
    %v261 = vld [vmem:[#allocation5 + $0xe8] sm:$0xff]
    %v262 = vld [vmem:[#allocation5 + $0xf0] sm:$0xff]
    %v263 = vld [vmem:[#allocation5 + $0xf8] sm:$0xff]
    %v264 = vld [vmem:[#allocation5 + $0x100] sm:$0xff]
    %v265 = vld [vmem:[#allocation5 + $0x108] sm:$0xff]
    %v266 = vld [vmem:[#allocation5 + $0x110] sm:$0xff]
    %v267 = vld [vmem:[#allocation5 + $0x118] sm:$0xff]
    %v268 = vld [vmem:[#allocation5 + $0x120] sm:$0xff]
    %v269 = vld [vmem:[#allocation5 + $0x128] sm:$0xff]
    %v270 = vld [vmem:[#allocation5 + $0x130] sm:$0xff]
    %v271 = vld [vmem:[#allocation5 + $0x138] sm:$0xff]
    %v272 = vld [vmem:[#allocation5 + $0x140] sm:$0xff]
    %v273 = vld [vmem:[#allocation5 + $0x148] sm:$0xff]
    %v274 = vld [vmem:[#allocation5 + $0x150] sm:$0xff]
    %v275 = vld [vmem:[#allocation5 + $0x158] sm:$0xff]
    %v276 = vld [vmem:[#allocation5 + $0x160] sm:$0xff]
    %v277 = vld [vmem:[#allocation5 + $0x168] sm:$0xff]
    %v278 = vld [vmem:[#allocation5 + $0x170] sm:$0xff]
    %v279 = vld [vmem:[#allocation5 + $0x178] sm:$0xff]
    %v280 = vld [vmem:[#allocation5 + $0x180] sm:$0xff]
    %v281 = vld [vmem:[#allocation5 + $0x188] sm:$0xff]
    %v282 = vld [vmem:[#allocation5 + $0x190] sm:$0xff]
    %v283 = vld [vmem:[#allocation5 + $0x198] sm:$0xff]
    %v284 = vld [vmem:[#allocation5 + $0x1a0] sm:$0xff]
    %v285 = vld [vmem:[#allocation5 + $0x1a8] sm:$0xff]
    %v286 = vld [vmem:[#allocation5 + $0x1b0] sm:$0xff]
    %v287 = vld [vmem:[#allocation5 + $0x1b8] sm:$0xff]
    %v288 = vld [vmem:[#allocation5 + $0x1c0] sm:$0xff]
    %v289 = vld [vmem:[#allocation5 + $0x1c8] sm:$0xff]
    %v290 = vld [vmem:[#allocation5 + $0x1d0] sm:$0xff]
    %v291 = vld [vmem:[#allocation5 + $0x1d8] sm:$0xff]
    %v292 = vld [vmem:[#allocation5 + $0x1e0] sm:$0xff]
    %v293 = vld [vmem:[#allocation5 + $0x1e8] sm:$0xff]
    %v294 = vld [vmem:[#allocation5 + $0x1f0] sm:$0xff]
    %v295 = vld [vmem:[#allocation5 + $0x1f8] sm:$0xff]
    %v296 = vld [vmem:[%s2 + $0x1] sm:$0x1]
    %v297 = vlaneseq
    %v298 = vshrl.u32 %v297, 7
    %v299 = vsub.s32 0, %v298
    %v300 = vrot.slane %v296, %v299
    %301 = vmatprep.subr.mxu0 0.0
    %302 = vmatpush1.msra.mxu0 %v232
    %303 = vmatprep.subr.mxu0 0.0
    %304 = vmatpush1.msra.mxu0 %v233
    %305 = vmatprep.subr.mxu0 0.0
    %306 = vmatpush1.msra.mxu0 %v234
    %307 = vmatprep.subr.mxu0 0.0
    %308 = vmatpush1.msra.mxu0 %v235
    %309 = vmatprep.subr.mxu0 0.0
    %310 = vmatpush1.msra.mxu0 %v236
    %311 = vmatprep.subr.mxu0 0.0
    %312 = vmatpush1.msra.mxu0 %v237
    %313 = vmatprep.subr.mxu0 0.0
    %314 = vmatpush1.msra.mxu0 %v238
    %315 = vmatprep.subr.mxu0 0.0
    %316 = vmatpush1.msra.mxu0 %v239
    %317 = vmatprep.subr.mxu0 0.0
    %318 = vmatpush1.msra.mxu0 %v240
    %319 = vmatprep.subr.mxu0 0.0
    %320 = vmatpush1.msra.mxu0 %v241
    %321 = vmatprep.subr.mxu0 0.0
    %322 = vmatpush1.msra.mxu0 %v242
    %323 = vmatprep.subr.mxu0 0.0
    %324 = vmatpush1.msra.mxu0 %v243
    %325 = vmatprep.subr.mxu0 0.0
    %326 = vmatpush1.msra.mxu0 %v244
    %327 = vmatprep.subr.mxu0 0.0
    %328 = vmatpush1.msra.mxu0 %v245
    %329 = vmatprep.subr.mxu0 0.0
    %330 = vmatpush1.msra.mxu0 %v246
    %331 = vmatprep.subr.mxu0 0.0
    %332 = vmatpush1.msra.mxu0 %v247
    %333 = vmatprep.subr.mxu0 0.0
    %334 = vmatpush1.msra.mxu0 %v248
    %335 = vmatprep.subr.mxu0 0.0
    %336 = vmatpush1.msra.mxu0 %v249
    %337 = vmatprep.subr.mxu0 0.0
    %338 = vmatpush1.msra.mxu0 %v250
    %339 = vmatprep.subr.mxu0 0.0
    %340 = vmatpush1.msra.mxu0 %v251
    %341 = vmatprep.subr.mxu0 0.0
    %342 = vmatpush1.msra.mxu0 %v252
    %343 = vmatprep.subr.mxu0 0.0
    %344 = vmatpush1.msra.mxu0 %v253
    %345 = vmatprep.subr.mxu0 0.0
    %346 = vmatpush1.msra.mxu0 %v254
    %347 = vmatprep.subr.mxu0 0.0
    %348 = vmatpush1.msra.mxu0 %v255
    %349 = vmatprep.subr.mxu0 0.0
    %350 = vmatpush1.msra.mxu0 %v256
    %351 = vmatprep.subr.mxu0 0.0
    %352 = vmatpush1.msra.mxu0 %v257
    %353 = vmatprep.subr.mxu0 0.0
    %354 = vmatpush1.msra.mxu0 %v258
    %355 = vmatprep.subr.mxu0 0.0
    %356 = vmatpush1.msra.mxu0 %v259
    %357 = vmatprep.subr.mxu0 0.0
    %358 = vmatpush1.msra.mxu0 %v260
    %359 = vmatprep.subr.mxu0 0.0
    %360 = vmatpush1.msra.mxu0 %v261
    %361 = vmatprep.subr.mxu0 0.0
    %362 = vmatpush1.msra.mxu0 %v262
    %363 = vmatprep.subr.mxu0 0.0
    %364 = vmatpush1.msra.mxu0 %v263
    %365 = vmatprep.mubr.f32.mxu0 %v229
    %366 = vmatmul.mubr.f32.gmra.mrb[0].mxu0 %v228
    %v367 = vpop.f32.mrb[0].mxu0
    %v368 = vadd.f32 %v300, %v367
    %v369 = vpop.f32.mrb[0].mxu0
    %370 = vdwg.mxu0
    %371 = vmatprep.subr.mxu0 0.0
    %372 = vmatpush1.msra.mxu0 %v264
    %373 = vmatprep.subr.mxu0 0.0
    %374 = vmatpush1.msra.mxu0 %v265
    %375 = vmatprep.subr.mxu0 0.0
    %376 = vmatpush1.msra.mxu0 %v266
    %377 = vmatprep.subr.mxu0 0.0
    %378 = vmatpush1.msra.mxu0 %v267
    %379 = vmatprep.subr.mxu0 0.0
    %380 = vmatpush1.msra.mxu0 %v268
    %381 = vmatprep.subr.mxu0 0.0
    %382 = vmatpush1.msra.mxu0 %v269
    %383 = vmatprep.subr.mxu0 0.0
    %384 = vmatpush1.msra.mxu0 %v270
    %385 = vmatprep.subr.mxu0 0.0
    %386 = vmatpush1.msra.mxu0 %v271
    %387 = vmatprep.subr.mxu0 0.0
    %388 = vmatpush1.msra.mxu0 %v272
    %389 = vmatprep.subr.mxu0 0.0
    %390 = vmatpush1.msra.mxu0 %v273
    %391 = vmatprep.subr.mxu0 0.0
    %392 = vmatpush1.msra.mxu0 %v274
    %393 = vmatprep.subr.mxu0 0.0
    %394 = vmatpush1.msra.mxu0 %v275
    %395 = vmatprep.subr.mxu0 0.0
    %396 = vmatpush1.msra.mxu0 %v276
    %397 = vmatprep.subr.mxu0 0.0
    %398 = vmatpush1.msra.mxu0 %v277
    %399 = vmatprep.subr.mxu0 0.0
    %400 = vmatpush1.msra.mxu0 %v278
    %401 = vmatprep.subr.mxu0 0.0
    %402 = vmatpush1.msra.mxu0 %v279
    %403 = vmatprep.subr.mxu0 0.0
    %404 = vmatpush1.msra.mxu0 %v280
    %405 = vmatprep.subr.mxu0 0.0
    %406 = vmatpush1.msra.mxu0 %v281
    %407 = vmatprep.subr.mxu0 0.0
    %408 = vmatpush1.msra.mxu0 %v282
    %409 = vmatprep.subr.mxu0 0.0
    %410 = vmatpush1.msra.mxu0 %v283
    %411 = vmatprep.subr.mxu0 0.0
    %412 = vmatpush1.msra.mxu0 %v284
    %413 = vmatprep.subr.mxu0 0.0
    %414 = vmatpush1.msra.mxu0 %v285
    %415 = vmatprep.subr.mxu0 0.0
    %416 = vmatpush1.msra.mxu0 %v286
    %417 = vmatprep.subr.mxu0 0.0
    %418 = vmatpush1.msra.mxu0 %v287
    %419 = vmatprep.subr.mxu0 0.0
    %420 = vmatpush1.msra.mxu0 %v288
    %421 = vmatprep.subr.mxu0 0.0
    %422 = vmatpush1.msra.mxu0 %v289
    %423 = vmatprep.subr.mxu0 0.0
    %424 = vmatpush1.msra.mxu0 %v290
    %425 = vmatprep.subr.mxu0 0.0
    %426 = vmatpush1.msra.mxu0 %v291
    %427 = vmatprep.subr.mxu0 0.0
    %428 = vmatpush1.msra.mxu0 %v292
    %429 = vmatprep.subr.mxu0 0.0
    %430 = vmatpush1.msra.mxu0 %v293
    %431 = vmatprep.subr.mxu0 0.0
    %432 = vmatpush1.msra.mxu0 %v294
    %433 = vmatprep.subr.mxu0 0.0
    %434 = vmatpush1.msra.mxu0 %v295
    %435 = vmatprep.mubr.f32.mxu0 %v231
    %436 = vmatmul.mubr.f32.gmra.mrb[0].mxu0 %v230
    %v437 = vpop.f32.mrb[0].mxu0
    %v438 = vadd.f32 %v368, %v437
    %v439 = vpop.f32.mrb[0].mxu0
    %440 = vdwg.mxu0
    %441 = vst [vmem:[#allocation7] sm:$0xff] %v438
    // Predicated region
    $region26: #{tpu_custom_call.1} parent=1 // pred_check
      _
    $region27: #{tpu_custom_call.1} parent=1 // pred_check_branch
      %443 = sbr.rel (0) target = $region29
    $region28: #{tpu_custom_call.1} parent=1 // pred_region
      %s445 = ssub.s32 128, 128
      %446 = vsyncadd [#allocation4], %s445
      %s448 = sshll.u32 [#allocation7], 4
      %s449 = int_to_ptr.vmem [resolvable:$true] %s448
      %451 = dma.vmem_to_hbm [thread:$0]  %s449, 128, %s4, [#allocation4]
    $region29: #{tpu_custom_call.1} parent=1 // pred_fallthru
      _
    // Predicated region
    $region30: #{tpu_custom_call.1} parent=1 // pred_check
      _
    $region31: #{tpu_custom_call.1} parent=1 // pred_check_branch
      %453 = sbr.rel (0) target = $region33
    $region32: #{tpu_custom_call.1} parent=1 // pred_region
      %454 = dma.done [#allocation4], 128
    $region33: #{tpu_custom_call.1} parent=1 // pred_fallthru
      _
    %455 = vsyncpa [#allocation3], 1
    %456 = vsyncpa [#allocation6], 1
    %457 = vsyncpa [#allocation4], 1

</llo_original>
